<compile_context>
chip_gen: v7x
topology: tpu7x:2x2x1
jax: 0.10.0
libtpu: 0.0.40
codegen_flags: <defaults>
</compile_context>

<pallas_src>
import math

import jax
import jax.numpy as jnp
from jax.experimental import pallas as pl
from jax.experimental.pallas import tpu as pltpu

MAX_LENGTH = 5000  # matches the PyTorch module's max_length


def make_pe_table(input_features: int, output_features: int) -> jnp.ndarray:
    """Deterministic fixed sinusoidal table, same formula as the module.

    The PyTorch code allocates pe with 5000 rows but assigns an
    (input_features, D/2) block into it; the rows that valid lookups can ever
    touch are exactly rows [0, input_features), so we build those.
    """
    assert output_features % 2 == 0, "even output_features assumed (as in module)"
    position = jnp.arange(input_features, dtype=jnp.float32)[:, None]          # (V, 1)
    div_term = jnp.exp(
        jnp.arange(0, output_features, 2, dtype=jnp.float32)
        * (-math.log(2.0 * MAX_LENGTH) / output_features)
    )                                                                           # (D/2,)
    args = position * div_term                                                  # (V, D/2)
    pe = jnp.zeros((input_features, output_features), dtype=jnp.float32)
    pe = pe.at[:, 0::2].set(jnp.sin(args))
    pe = pe.at[:, 1::2].set(jnp.cos(args))
    return pe


def _round_up(x: int, m: int) -> int:
    return ((x + m - 1) // m) * m


def _embed_kernel(idx_ref, table_t_ref, out_ref):
    # idx_ref:     (1, block_n) int32   -- lookup indices, lane-dense
    # table_t_ref: (D, V)       float32 -- transposed embedding table, resident
    # out_ref:     (D, block_n) float32 -- transposed output tile, lane-dense
    idx = idx_ref[...]                              # (1, bn)
    tab = table_t_ref[...]                          # (D, V)
    d, v = tab.shape

    # Exact gather as a fully unrolled VPU compare/select over the V table rows.
    # V is a small calendar cardinality here, so this is a handful of cheap
    # elementwise ops; padded / out-of-range indices fall through to zeros
    # (same behaviour as the previous one-hot path).
    acc = jnp.zeros(out_ref.shape, dtype=jnp.float32)
    for row in range(v):
        col = tab[:, row:row + 1]                   # (D, 1) static lane slice
        acc = jnp.where(idx == row, col, acc)       # broadcast -> (D, bn)
    out_ref[...] = acc


def informer_fixed_embedding(indices: jnp.ndarray, table: jnp.ndarray,
                             *, block_n: int = 512) -> jnp.ndarray:
    """Embedding lookup: returns table[indices] with shape indices.shape + (D,)."""
    orig_shape = indices.shape
    v, d = table.shape
    assert d % 8 == 0, "output_features must be a multiple of 8 for (8,128) tiling"
    # TODO(synk): if V ever scales toward the nominal 5000-row table, replace the
    # unrolled compare/select with a scalar-prefetch DMA row gather
    # (pl.Element(1) table blocks) instead.
    assert v <= 128, "unrolled gather path assumes a small calendar vocabulary"

    idx_flat = indices.reshape(-1).astype(jnp.int32)
    n = idx_flat.shape[0]

    # Lane-dense blocking along the lookup axis: block_n is a multiple of 128 and
    # as large as the problem allows (default 512) to amortize per-step overhead.
    block_n = min(block_n, _round_up(max(n, 1), 128))
    assert block_n % 128 == 0
    n_pad = _round_up(n, block_n)

    idx_row = jnp.pad(idx_flat, (0, n_pad - n)).reshape(1, n_pad)   # (1, N) lane-dense
    table_t = table.T                                               # (D, V)

    cost = pl.CostEstimate(
        flops=2 * v * d * n_pad,                      # compares + selects (VPU)
        transcendentals=0,
        bytes_accessed=4 * (n_pad + v * d + d * n_pad),
    )

    out_t = pl.pallas_call(
        _embed_kernel,
        out_shape=jax.ShapeDtypeStruct((d, n_pad), table.dtype),
        grid_spec=pltpu.PrefetchScalarGridSpec(
            num_scalar_prefetch=0,
            grid=(n_pad // block_n,),
            in_specs=[
                pl.BlockSpec((1, block_n), lambda i: (0, i)),   # indices, lane-dense
                pl.BlockSpec((d, v), lambda i: (0, 0)),         # full table, resident
            ],
            out_specs=pl.BlockSpec((d, block_n), lambda i: (0, i)),
        ),
        compiler_params=pltpu.CompilerParams(
            dimension_semantics=("parallel",),   # shards lookup axis across TCs (v7x)
        ),
        cost_estimate=cost,
    )(idx_row, table_t)

    # Layout plumbing back to the module's (..., D) output layout.
    return out_t[:, :n].T.reshape(orig_shape + (d,))


if __name__ == "__main__":
    input_features = 16    # vocabulary size (e.g. #discrete time features)
    output_features = 32   # embedding dim
    batch, seq = 2, 8

    table = make_pe_table(input_features, output_features)

    key = jax.random.PRNGKey(0)
    indices = jax.random.randint(key, (batch, seq), 0, input_features, dtype=jnp.int32)

    out = informer_fixed_embedding(indices, table)
    out = jax.block_until_ready(out)

    # reference: plain gather
    ref = jnp.take(table, indices, axis=0)
    assert out.shape == (batch, seq, output_features)
    assert out.dtype == jnp.float32
    assert jnp.allclose(out, ref, atol=1e-6), "mismatch vs reference gather"

    print("KERNEL_OK")
</pallas_src>

<mosaic_0001>
module attributes {stable_mosaic.version = 11 : i64} {
  func.func @_embed_kernel(%arg0: i32, %arg1: memref<1x128xi32, #tpu.memory_space<vmem>>, %arg2: memref<32x16xf32, #tpu.memory_space<vmem>>, %arg3: memref<32x128xf32, #tpu.memory_space<vmem>>) attributes {dimension_semantics = [#tpu.dimension_semantics<parallel>], iteration_bounds = array<i64: 1>, scalar_prefetch = 0 : i64, scratch_operands = 0 : i64, tpu.core_type = #tpu.core_type<tc>, window_params = [{transform_indices = @transform_0, window_bounds = array<i64: 1, 128>}, {pipeline_mode = #tpu.pipeline_mode<synchronous>, transform_indices = @transform_1, window_bounds = array<i64: 32, 16>}, {transform_indices = @transform_2, window_bounds = array<i64: 32, 128>}]} {
    %c0 = arith.constant 0 : index
    %c0_0 = arith.constant 0 : index
    %0 = vector.load %arg1[%c0, %c0_0] : memref<1x128xi32, #tpu.memory_space<vmem>>, vector<1x128xi32>
    %c0_1 = arith.constant 0 : index
    %c0_2 = arith.constant 0 : index
    %1 = vector.load %arg2[%c0_1, %c0_2] : memref<32x16xf32, #tpu.memory_space<vmem>>, vector<32x16xf32>
    %cst = arith.constant 0.000000e+00 : f32
    %2 = vector.broadcast %cst : f32 to vector<32x128xf32>
    %3 = vector.extract_strided_slice %1 {offsets = [0, 0], sizes = [32, 1], strides = [1, 1]} : vector<32x16xf32> to vector<32x1xf32>
    %c0_i32 = arith.constant 0 : i32
    %4 = vector.broadcast %c0_i32 : i32 to vector<1x128xi32>
    %5 = arith.cmpi eq, %0, %4 : vector<1x128xi32>
    %6 = vector.shape_cast %5 : vector<1x128xi1> to vector<1x128xi1>
    %7 = vector.broadcast %6 : vector<1x128xi1> to vector<32x128xi1>
    %8 = vector.shape_cast %3 : vector<32x1xf32> to vector<32x1xf32>
    %9 = vector.broadcast %8 : vector<32x1xf32> to vector<32x128xf32>
    %10 = arith.select %7, %9, %2 : vector<32x128xi1>, vector<32x128xf32>
    %11 = vector.extract_strided_slice %1 {offsets = [0, 1], sizes = [32, 1], strides = [1, 1]} : vector<32x16xf32> to vector<32x1xf32>
    %c1_i32 = arith.constant 1 : i32
    %12 = vector.broadcast %c1_i32 : i32 to vector<1x128xi32>
    %13 = arith.cmpi eq, %0, %12 : vector<1x128xi32>
    %14 = vector.shape_cast %13 : vector<1x128xi1> to vector<1x128xi1>
    %15 = vector.broadcast %14 : vector<1x128xi1> to vector<32x128xi1>
    %16 = vector.shape_cast %11 : vector<32x1xf32> to vector<32x1xf32>
    %17 = vector.broadcast %16 : vector<32x1xf32> to vector<32x128xf32>
    %18 = arith.select %15, %17, %10 : vector<32x128xi1>, vector<32x128xf32>
    %19 = vector.extract_strided_slice %1 {offsets = [0, 2], sizes = [32, 1], strides = [1, 1]} : vector<32x16xf32> to vector<32x1xf32>
    %c2_i32 = arith.constant 2 : i32
    %20 = vector.broadcast %c2_i32 : i32 to vector<1x128xi32>
    %21 = arith.cmpi eq, %0, %20 : vector<1x128xi32>
    %22 = vector.shape_cast %21 : vector<1x128xi1> to vector<1x128xi1>
    %23 = vector.broadcast %22 : vector<1x128xi1> to vector<32x128xi1>
    %24 = vector.shape_cast %19 : vector<32x1xf32> to vector<32x1xf32>
    %25 = vector.broadcast %24 : vector<32x1xf32> to vector<32x128xf32>
    %26 = arith.select %23, %25, %18 : vector<32x128xi1>, vector<32x128xf32>
    %27 = vector.extract_strided_slice %1 {offsets = [0, 3], sizes = [32, 1], strides = [1, 1]} : vector<32x16xf32> to vector<32x1xf32>
    %c3_i32 = arith.constant 3 : i32
    %28 = vector.broadcast %c3_i32 : i32 to vector<1x128xi32>
    %29 = arith.cmpi eq, %0, %28 : vector<1x128xi32>
    %30 = vector.shape_cast %29 : vector<1x128xi1> to vector<1x128xi1>
    %31 = vector.broadcast %30 : vector<1x128xi1> to vector<32x128xi1>
    %32 = vector.shape_cast %27 : vector<32x1xf32> to vector<32x1xf32>
    %33 = vector.broadcast %32 : vector<32x1xf32> to vector<32x128xf32>
    %34 = arith.select %31, %33, %26 : vector<32x128xi1>, vector<32x128xf32>
    %35 = vector.extract_strided_slice %1 {offsets = [0, 4], sizes = [32, 1], strides = [1, 1]} : vector<32x16xf32> to vector<32x1xf32>
    %c4_i32 = arith.constant 4 : i32
    %36 = vector.broadcast %c4_i32 : i32 to vector<1x128xi32>
    %37 = arith.cmpi eq, %0, %36 : vector<1x128xi32>
    %38 = vector.shape_cast %37 : vector<1x128xi1> to vector<1x128xi1>
    %39 = vector.broadcast %38 : vector<1x128xi1> to vector<32x128xi1>
    %40 = vector.shape_cast %35 : vector<32x1xf32> to vector<32x1xf32>
    %41 = vector.broadcast %40 : vector<32x1xf32> to vector<32x128xf32>
    %42 = arith.select %39, %41, %34 : vector<32x128xi1>, vector<32x128xf32>
    %43 = vector.extract_strided_slice %1 {offsets = [0, 5], sizes = [32, 1], strides = [1, 1]} : vector<32x16xf32> to vector<32x1xf32>
    %c5_i32 = arith.constant 5 : i32
    %44 = vector.broadcast %c5_i32 : i32 to vector<1x128xi32>
    %45 = arith.cmpi eq, %0, %44 : vector<1x128xi32>
    %46 = vector.shape_cast %45 : vector<1x128xi1> to vector<1x128xi1>
    %47 = vector.broadcast %46 : vector<1x128xi1> to vector<32x128xi1>
    %48 = vector.shape_cast %43 : vector<32x1xf32> to vector<32x1xf32>
    %49 = vector.broadcast %48 : vector<32x1xf32> to vector<32x128xf32>
    %50 = arith.select %47, %49, %42 : vector<32x128xi1>, vector<32x128xf32>
    %51 = vector.extract_strided_slice %1 {offsets = [0, 6], sizes = [32, 1], strides = [1, 1]} : vector<32x16xf32> to vector<32x1xf32>
    %c6_i32 = arith.constant 6 : i32
    %52 = vector.broadcast %c6_i32 : i32 to vector<1x128xi32>
    %53 = arith.cmpi eq, %0, %52 : vector<1x128xi32>
    %54 = vector.shape_cast %53 : vector<1x128xi1> to vector<1x128xi1>
    %55 = vector.broadcast %54 : vector<1x128xi1> to vector<32x128xi1>
    %56 = vector.shape_cast %51 : vector<32x1xf32> to vector<32x1xf32>
    %57 = vector.broadcast %56 : vector<32x1xf32> to vector<32x128xf32>
    %58 = arith.select %55, %57, %50 : vector<32x128xi1>, vector<32x128xf32>
    %59 = vector.extract_strided_slice %1 {offsets = [0, 7], sizes = [32, 1], strides = [1, 1]} : vector<32x16xf32> to vector<32x1xf32>
    %c7_i32 = arith.constant 7 : i32
    %60 = vector.broadcast %c7_i32 : i32 to vector<1x128xi32>
    %61 = arith.cmpi eq, %0, %60 : vector<1x128xi32>
    %62 = vector.shape_cast %61 : vector<1x128xi1> to vector<1x128xi1>
    %63 = vector.broadcast %62 : vector<1x128xi1> to vector<32x128xi1>
    %64 = vector.shape_cast %59 : vector<32x1xf32> to vector<32x1xf32>
    %65 = vector.broadcast %64 : vector<32x1xf32> to vector<32x128xf32>
    %66 = arith.select %63, %65, %58 : vector<32x128xi1>, vector<32x128xf32>
    %67 = vector.extract_strided_slice %1 {offsets = [0, 8], sizes = [32, 1], strides = [1, 1]} : vector<32x16xf32> to vector<32x1xf32>
    %c8_i32 = arith.constant 8 : i32
    %68 = vector.broadcast %c8_i32 : i32 to vector<1x128xi32>
    %69 = arith.cmpi eq, %0, %68 : vector<1x128xi32>
    %70 = vector.shape_cast %69 : vector<1x128xi1> to vector<1x128xi1>
    %71 = vector.broadcast %70 : vector<1x128xi1> to vector<32x128xi1>
    %72 = vector.shape_cast %67 : vector<32x1xf32> to vector<32x1xf32>
    %73 = vector.broadcast %72 : vector<32x1xf32> to vector<32x128xf32>
    %74 = arith.select %71, %73, %66 : vector<32x128xi1>, vector<32x128xf32>
    %75 = vector.extract_strided_slice %1 {offsets = [0, 9], sizes = [32, 1], strides = [1, 1]} : vector<32x16xf32> to vector<32x1xf32>
    %c9_i32 = arith.constant 9 : i32
    %76 = vector.broadcast %c9_i32 : i32 to vector<1x128xi32>
    %77 = arith.cmpi eq, %0, %76 : vector<1x128xi32>
    %78 = vector.shape_cast %77 : vector<1x128xi1> to vector<1x128xi1>
    %79 = vector.broadcast %78 : vector<1x128xi1> to vector<32x128xi1>
    %80 = vector.shape_cast %75 : vector<32x1xf32> to vector<32x1xf32>
    %81 = vector.broadcast %80 : vector<32x1xf32> to vector<32x128xf32>
    %82 = arith.select %79, %81, %74 : vector<32x128xi1>, vector<32x128xf32>
    %83 = vector.extract_strided_slice %1 {offsets = [0, 10], sizes = [32, 1], strides = [1, 1]} : vector<32x16xf32> to vector<32x1xf32>
    %c10_i32 = arith.constant 10 : i32
    %84 = vector.broadcast %c10_i32 : i32 to vector<1x128xi32>
    %85 = arith.cmpi eq, %0, %84 : vector<1x128xi32>
    %86 = vector.shape_cast %85 : vector<1x128xi1> to vector<1x128xi1>
    %87 = vector.broadcast %86 : vector<1x128xi1> to vector<32x128xi1>
    %88 = vector.shape_cast %83 : vector<32x1xf32> to vector<32x1xf32>
    %89 = vector.broadcast %88 : vector<32x1xf32> to vector<32x128xf32>
    %90 = arith.select %87, %89, %82 : vector<32x128xi1>, vector<32x128xf32>
    %91 = vector.extract_strided_slice %1 {offsets = [0, 11], sizes = [32, 1], strides = [1, 1]} : vector<32x16xf32> to vector<32x1xf32>
    %c11_i32 = arith.constant 11 : i32
    %92 = vector.broadcast %c11_i32 : i32 to vector<1x128xi32>
    %93 = arith.cmpi eq, %0, %92 : vector<1x128xi32>
    %94 = vector.shape_cast %93 : vector<1x128xi1> to vector<1x128xi1>
    %95 = vector.broadcast %94 : vector<1x128xi1> to vector<32x128xi1>
    %96 = vector.shape_cast %91 : vector<32x1xf32> to vector<32x1xf32>
    %97 = vector.broadcast %96 : vector<32x1xf32> to vector<32x128xf32>
    %98 = arith.select %95, %97, %90 : vector<32x128xi1>, vector<32x128xf32>
    %99 = vector.extract_strided_slice %1 {offsets = [0, 12], sizes = [32, 1], strides = [1, 1]} : vector<32x16xf32> to vector<32x1xf32>
    %c12_i32 = arith.constant 12 : i32
    %100 = vector.broadcast %c12_i32 : i32 to vector<1x128xi32>
    %101 = arith.cmpi eq, %0, %100 : vector<1x128xi32>
    %102 = vector.shape_cast %101 : vector<1x128xi1> to vector<1x128xi1>
    %103 = vector.broadcast %102 : vector<1x128xi1> to vector<32x128xi1>
    %104 = vector.shape_cast %99 : vector<32x1xf32> to vector<32x1xf32>
    %105 = vector.broadcast %104 : vector<32x1xf32> to vector<32x128xf32>
    %106 = arith.select %103, %105, %98 : vector<32x128xi1>, vector<32x128xf32>
    %107 = vector.extract_strided_slice %1 {offsets = [0, 13], sizes = [32, 1], strides = [1, 1]} : vector<32x16xf32> to vector<32x1xf32>
    %c13_i32 = arith.constant 13 : i32
    %108 = vector.broadcast %c13_i32 : i32 to vector<1x128xi32>
    %109 = arith.cmpi eq, %0, %108 : vector<1x128xi32>
    %110 = vector.shape_cast %109 : vector<1x128xi1> to vector<1x128xi1>
    %111 = vector.broadcast %110 : vector<1x128xi1> to vector<32x128xi1>
    %112 = vector.shape_cast %107 : vector<32x1xf32> to vector<32x1xf32>
    %113 = vector.broadcast %112 : vector<32x1xf32> to vector<32x128xf32>
    %114 = arith.select %111, %113, %106 : vector<32x128xi1>, vector<32x128xf32>
    %115 = vector.extract_strided_slice %1 {offsets = [0, 14], sizes = [32, 1], strides = [1, 1]} : vector<32x16xf32> to vector<32x1xf32>
    %c14_i32 = arith.constant 14 : i32
    %116 = vector.broadcast %c14_i32 : i32 to vector<1x128xi32>
    %117 = arith.cmpi eq, %0, %116 : vector<1x128xi32>
    %118 = vector.shape_cast %117 : vector<1x128xi1> to vector<1x128xi1>
    %119 = vector.broadcast %118 : vector<1x128xi1> to vector<32x128xi1>
    %120 = vector.shape_cast %115 : vector<32x1xf32> to vector<32x1xf32>
    %121 = vector.broadcast %120 : vector<32x1xf32> to vector<32x128xf32>
    %122 = arith.select %119, %121, %114 : vector<32x128xi1>, vector<32x128xf32>
    %123 = vector.extract_strided_slice %1 {offsets = [0, 15], sizes = [32, 1], strides = [1, 1]} : vector<32x16xf32> to vector<32x1xf32>
    %c15_i32 = arith.constant 15 : i32
    %124 = vector.broadcast %c15_i32 : i32 to vector<1x128xi32>
    %125 = arith.cmpi eq, %0, %124 : vector<1x128xi32>
    %126 = vector.shape_cast %125 : vector<1x128xi1> to vector<1x128xi1>
    %127 = vector.broadcast %126 : vector<1x128xi1> to vector<32x128xi1>
    %128 = vector.shape_cast %123 : vector<32x1xf32> to vector<32x1xf32>
    %129 = vector.broadcast %128 : vector<32x1xf32> to vector<32x128xf32>
    %130 = arith.select %127, %129, %122 : vector<32x128xi1>, vector<32x128xf32>
    %c0_3 = arith.constant 0 : index
    %c0_4 = arith.constant 0 : index
    %131 = vector.load %arg3[%c0_3, %c0_4] : memref<32x128xf32, #tpu.memory_space<vmem>>, vector<32x128xf32>
    tpu.vector_store %arg3[%c0_3, %c0_4], %130 {strides = array<i32>} : memref<32x128xf32, #tpu.memory_space<vmem>>, vector<32x128xf32>,
    return
  }
  func.func @transform_0(%arg0: i32) -> (i32, i32) {
    %c0_i32 = arith.constant 0 : i32
    %c0_i32_0 = arith.constant 0 : i32
    return %c0_i32, %arg0 : i32, i32
  }
  func.func @transform_1(%arg0: i32) -> (i32, i32) {
    %c0_i32 = arith.constant 0 : i32
    %c0_i32_0 = arith.constant 0 : i32
    %c0_i32_1 = arith.constant 0 : i32
    return %c0_i32, %c0_i32_0 : i32, i32
  }
  func.func @transform_2(%arg0: i32) -> (i32, i32) {
    %c0_i32 = arith.constant 0 : i32
    %c0_i32_0 = arith.constant 0 : i32
    return %c0_i32, %arg0 : i32, i32
  }
}

</mosaic_0001>

<llo_original>
// kernel: tpu_custom_call.1
$region0: #{tpu_custom_call.1}
  #allocation0 [shape = 'u32[]', space=smem, size = 0x4, offset = 0x4, fixed_abs, tag = 'smem constant byte address 0x4 - core index']
  #allocation1 [shape = 'u32[144,128]{1,0:T(1,128)}', space=vmem, size = 0x12000, scoped, tag = 'internal scratch']
  %s0 = inlined_call_operand.vmem [shape: s32[1,128], index: 0, kind: input, shape index: {}]
  %s1 = inlined_call_operand.vmem [shape: f32[32,16], index: 1, kind: input, shape index: {}]
  %s2 = inlined_call_operand.hbm [shape: f32[32,128], index: 2, kind: output, shape index: {}]
  %s3 = sld [smem:[#allocation0]]
  $region18: #{tpu_custom_call.1} parent=0
    _
  %s5 = ssub.s32 1, %s3
  %s6 = scalar_select 0, %s5, %s3
  $region1: #{tpu_custom_call.1} parent=0
    #allocation2 [shape = 'u8[16384]{0}', space=vmem, size = 0x4000, scoped, tag = 'output window, operand 0, single buffered']
    #allocation3 [shape = 's32[1]{0}', space=sflag, size = 0x4, scoped, tag = 'scoped memory for tpu_custom_call.1']
    %7 = vsyncpa [#allocation3], 0
    // Predicated region
    $region2: #{tpu_custom_call.1} parent=1 // pred_check
      _
    $region3: #{tpu_custom_call.1} parent=1 // pred_check_branch
      %9 = sbr.rel (0) target = $region5
    $region4: #{tpu_custom_call.1} parent=1 // pred_region
      _
    $region5: #{tpu_custom_call.1} parent=1 // pred_fallthru
      _
    // Predicated region
    $region6: #{tpu_custom_call.1} parent=1 // pred_check
      _
    $region7: #{tpu_custom_call.1} parent=1 // pred_check_branch
      %11 = sbr.rel (0) target = $region9
    $region8: #{tpu_custom_call.1} parent=1 // pred_region
      _
    $region9: #{tpu_custom_call.1} parent=1 // pred_fallthru
      _
    %v12 = vld [vmem:[%s0] sm:$0x1]
    %v13 = vld [vmem:[%s1] sm:$0xff]
    %v14 = vld [vmem:[%s1 + $0x8] sm:$0xff]
    %v15 = vld [vmem:[%s1 + $0x10] sm:$0xff]
    %v16 = vld [vmem:[%s1 + $0x18] sm:$0xff]
    %vm17 = vcmp.eq.s32.totalorder %v12, 0
    %v18 = vsel %vm17, 1, 0
    %v19 = vlaneseq
    %v20 = vshrl.u32 %v19, 7
    %v21 = vsub.s32 0, %v20
    %v22 = vrot.slane %v18, %v21
    %vm23 = vcmp.eq.s32.totalorder %v22, 1
    %25 = vset.pattern.permute.xlu0 0
    %26 = vperm.xlu0 %25, %v13
    %v27 = vpop.permute.xlu0 %26
    %30 = vset.pattern.permute.xlu0 0
    %31 = vperm.xlu0 %30, %v14
    %v32 = vpop.permute.xlu0 %31
    %35 = vset.pattern.permute.xlu0 0
    %36 = vperm.xlu0 %35, %v15
    %v37 = vpop.permute.xlu0 %36
    %40 = vset.pattern.permute.xlu0 0
    %41 = vperm.xlu0 %40, %v16
    %v42 = vpop.permute.xlu0 %41
    %v44 = vsel %vm23, %v27, 0.0
    %v45 = vsel %vm23, %v32, 0.0
    %v46 = vsel %vm23, %v37, 0.0
    %v47 = vsel %vm23, %v42, 0.0
    %vm48 = vcmp.eq.s32.totalorder %v12, 1
    %v49 = vsel %vm48, 1, 0
    %v50 = vlaneseq
    %v51 = vshrl.u32 %v50, 7
    %v52 = vsub.s32 0, %v51
    %v53 = vrot.slane %v49, %v52
    %vm54 = vcmp.eq.s32.totalorder %v53, 1
    %55 = vset.pattern.permute.xlu0 1
    %56 = vperm.xlu0 %55, %v13
    %v57 = vpop.permute.xlu0 %56
    %59 = vset.pattern.permute.xlu0 1
    %60 = vperm.xlu0 %59, %v14
    %v61 = vpop.permute.xlu0 %60
    %63 = vset.pattern.permute.xlu0 1
    %64 = vperm.xlu0 %63, %v15
    %v65 = vpop.permute.xlu0 %64
    %67 = vset.pattern.permute.xlu0 1
    %68 = vperm.xlu0 %67, %v16
    %v69 = vpop.permute.xlu0 %68
    %v71 = vsel %vm54, %v57, %v44
    %v72 = vsel %vm54, %v61, %v45
    %v73 = vsel %vm54, %v65, %v46
    %v74 = vsel %vm54, %v69, %v47
    %vm75 = vcmp.eq.s32.totalorder %v12, 2
    %v76 = vsel %vm75, 1, 0
    %v77 = vlaneseq
    %v78 = vshrl.u32 %v77, 7
    %v79 = vsub.s32 0, %v78
    %v80 = vrot.slane %v76, %v79
    %vm81 = vcmp.eq.s32.totalorder %v80, 1
    %82 = vset.pattern.permute.xlu0 2
    %83 = vperm.xlu0 %82, %v13
    %v84 = vpop.permute.xlu0 %83
    %86 = vset.pattern.permute.xlu0 2
    %87 = vperm.xlu0 %86, %v14
    %v88 = vpop.permute.xlu0 %87
    %90 = vset.pattern.permute.xlu0 2
    %91 = vperm.xlu0 %90, %v15
    %v92 = vpop.permute.xlu0 %91
    %94 = vset.pattern.permute.xlu0 2
    %95 = vperm.xlu0 %94, %v16
    %v96 = vpop.permute.xlu0 %95
    %v98 = vsel %vm81, %v84, %v71
    %v99 = vsel %vm81, %v88, %v72
    %v100 = vsel %vm81, %v92, %v73
    %v101 = vsel %vm81, %v96, %v74
    %vm102 = vcmp.eq.s32.totalorder %v12, 3
    %v103 = vsel %vm102, 1, 0
    %v104 = vlaneseq
    %v105 = vshrl.u32 %v104, 7
    %v106 = vsub.s32 0, %v105
    %v107 = vrot.slane %v103, %v106
    %vm108 = vcmp.eq.s32.totalorder %v107, 1
    %109 = vset.pattern.permute.xlu0 3
    %110 = vperm.xlu0 %109, %v13
    %v111 = vpop.permute.xlu0 %110
    %113 = vset.pattern.permute.xlu0 3
    %114 = vperm.xlu0 %113, %v14
    %v115 = vpop.permute.xlu0 %114
    %117 = vset.pattern.permute.xlu0 3
    %118 = vperm.xlu0 %117, %v15
    %v119 = vpop.permute.xlu0 %118
    %121 = vset.pattern.permute.xlu0 3
    %122 = vperm.xlu0 %121, %v16
    %v123 = vpop.permute.xlu0 %122
    %v125 = vsel %vm108, %v111, %v98
    %v126 = vsel %vm108, %v115, %v99
    %v127 = vsel %vm108, %v119, %v100
    %v128 = vsel %vm108, %v123, %v101
    %vm129 = vcmp.eq.s32.totalorder %v12, 4
    %v130 = vsel %vm129, 1, 0
    %v131 = vlaneseq
    %v132 = vshrl.u32 %v131, 7
    %v133 = vsub.s32 0, %v132
    %v134 = vrot.slane %v130, %v133
    %vm135 = vcmp.eq.s32.totalorder %v134, 1
    %136 = vset.pattern.permute.xlu0 4
    %137 = vperm.xlu0 %136, %v13
    %v138 = vpop.permute.xlu0 %137
    %140 = vset.pattern.permute.xlu0 4
    %141 = vperm.xlu0 %140, %v14
    %v142 = vpop.permute.xlu0 %141
    %144 = vset.pattern.permute.xlu0 4
    %145 = vperm.xlu0 %144, %v15
    %v146 = vpop.permute.xlu0 %145
    %148 = vset.pattern.permute.xlu0 4
    %149 = vperm.xlu0 %148, %v16
    %v150 = vpop.permute.xlu0 %149
    %v152 = vsel %vm135, %v138, %v125
    %v153 = vsel %vm135, %v142, %v126
    %v154 = vsel %vm135, %v146, %v127
    %v155 = vsel %vm135, %v150, %v128
    %vm156 = vcmp.eq.s32.totalorder %v12, 5
    %v157 = vsel %vm156, 1, 0
    %v158 = vlaneseq
    %v159 = vshrl.u32 %v158, 7
    %v160 = vsub.s32 0, %v159
    %v161 = vrot.slane %v157, %v160
    %vm162 = vcmp.eq.s32.totalorder %v161, 1
    %163 = vset.pattern.permute.xlu0 5
    %164 = vperm.xlu0 %163, %v13
    %v165 = vpop.permute.xlu0 %164
    %167 = vset.pattern.permute.xlu0 5
    %168 = vperm.xlu0 %167, %v14
    %v169 = vpop.permute.xlu0 %168
    %171 = vset.pattern.permute.xlu0 5
    %172 = vperm.xlu0 %171, %v15
    %v173 = vpop.permute.xlu0 %172
    %175 = vset.pattern.permute.xlu0 5
    %176 = vperm.xlu0 %175, %v16
    %v177 = vpop.permute.xlu0 %176
    %v179 = vsel %vm162, %v165, %v152
    %v180 = vsel %vm162, %v169, %v153
    %v181 = vsel %vm162, %v173, %v154
    %v182 = vsel %vm162, %v177, %v155
    %vm183 = vcmp.eq.s32.totalorder %v12, 6
    %v184 = vsel %vm183, 1, 0
    %v185 = vlaneseq
    %v186 = vshrl.u32 %v185, 7
    %v187 = vsub.s32 0, %v186
    %v188 = vrot.slane %v184, %v187
    %vm189 = vcmp.eq.s32.totalorder %v188, 1
    %190 = vset.pattern.permute.xlu0 6
    %191 = vperm.xlu0 %190, %v13
    %v192 = vpop.permute.xlu0 %191
    %194 = vset.pattern.permute.xlu0 6
    %195 = vperm.xlu0 %194, %v14
    %v196 = vpop.permute.xlu0 %195
    %198 = vset.pattern.permute.xlu0 6
    %199 = vperm.xlu0 %198, %v15
    %v200 = vpop.permute.xlu0 %199
    %202 = vset.pattern.permute.xlu0 6
    %203 = vperm.xlu0 %202, %v16
    %v204 = vpop.permute.xlu0 %203
    %v206 = vsel %vm189, %v192, %v179
    %v207 = vsel %vm189, %v196, %v180
    %v208 = vsel %vm189, %v200, %v181
    %v209 = vsel %vm189, %v204, %v182
    %vm210 = vcmp.eq.s32.totalorder %v12, 7
    %v211 = vsel %vm210, 1, 0
    %v212 = vlaneseq
    %v213 = vshrl.u32 %v212, 7
    %v214 = vsub.s32 0, %v213
    %v215 = vrot.slane %v211, %v214
    %vm216 = vcmp.eq.s32.totalorder %v215, 1
    %217 = vset.pattern.permute.xlu0 7
    %218 = vperm.xlu0 %217, %v13
    %v219 = vpop.permute.xlu0 %218
    %221 = vset.pattern.permute.xlu0 7
    %222 = vperm.xlu0 %221, %v14
    %v223 = vpop.permute.xlu0 %222
    %225 = vset.pattern.permute.xlu0 7
    %226 = vperm.xlu0 %225, %v15
    %v227 = vpop.permute.xlu0 %226
    %229 = vset.pattern.permute.xlu0 7
    %230 = vperm.xlu0 %229, %v16
    %v231 = vpop.permute.xlu0 %230
    %v233 = vsel %vm216, %v219, %v206
    %v234 = vsel %vm216, %v223, %v207
    %v235 = vsel %vm216, %v227, %v208
    %v236 = vsel %vm216, %v231, %v209
    %vm237 = vcmp.eq.s32.totalorder %v12, 8
    %v238 = vsel %vm237, 1, 0
    %v239 = vlaneseq
    %v240 = vshrl.u32 %v239, 7
    %v241 = vsub.s32 0, %v240
    %v242 = vrot.slane %v238, %v241
    %vm243 = vcmp.eq.s32.totalorder %v242, 1
    %244 = vset.pattern.permute.xlu0 8
    %245 = vperm.xlu0 %244, %v13
    %v246 = vpop.permute.xlu0 %245
    %248 = vset.pattern.permute.xlu0 8
    %249 = vperm.xlu0 %248, %v14
    %v250 = vpop.permute.xlu0 %249
    %252 = vset.pattern.permute.xlu0 8
    %253 = vperm.xlu0 %252, %v15
    %v254 = vpop.permute.xlu0 %253
    %256 = vset.pattern.permute.xlu0 8
    %257 = vperm.xlu0 %256, %v16
    %v258 = vpop.permute.xlu0 %257
    %v260 = vsel %vm243, %v246, %v233
    %v261 = vsel %vm243, %v250, %v234
    %v262 = vsel %vm243, %v254, %v235
    %v263 = vsel %vm243, %v258, %v236
    %vm264 = vcmp.eq.s32.totalorder %v12, 9
    %v265 = vsel %vm264, 1, 0
    %v266 = vlaneseq
    %v267 = vshrl.u32 %v266, 7
    %v268 = vsub.s32 0, %v267
    %v269 = vrot.slane %v265, %v268
    %vm270 = vcmp.eq.s32.totalorder %v269, 1
    %271 = vset.pattern.permute.xlu0 9
    %272 = vperm.xlu0 %271, %v13
    %v273 = vpop.permute.xlu0 %272
    %275 = vset.pattern.permute.xlu0 9
    %276 = vperm.xlu0 %275, %v14
    %v277 = vpop.permute.xlu0 %276
    %279 = vset.pattern.permute.xlu0 9
    %280 = vperm.xlu0 %279, %v15
    %v281 = vpop.permute.xlu0 %280
    %283 = vset.pattern.permute.xlu0 9
    %284 = vperm.xlu0 %283, %v16
    %v285 = vpop.permute.xlu0 %284
    %v287 = vsel %vm270, %v273, %v260
    %v288 = vsel %vm270, %v277, %v261
    %v289 = vsel %vm270, %v281, %v262
    %v290 = vsel %vm270, %v285, %v263
    %vm291 = vcmp.eq.s32.totalorder %v12, 10
    %v292 = vsel %vm291, 1, 0
    %v293 = vlaneseq
    %v294 = vshrl.u32 %v293, 7
    %v295 = vsub.s32 0, %v294
    %v296 = vrot.slane %v292, %v295
    %vm297 = vcmp.eq.s32.totalorder %v296, 1
    %298 = vset.pattern.permute.xlu0 10
    %299 = vperm.xlu0 %298, %v13
    %v300 = vpop.permute.xlu0 %299
    %302 = vset.pattern.permute.xlu0 10
    %303 = vperm.xlu0 %302, %v14
    %v304 = vpop.permute.xlu0 %303
    %306 = vset.pattern.permute.xlu0 10
    %307 = vperm.xlu0 %306, %v15
    %v308 = vpop.permute.xlu0 %307
    %310 = vset.pattern.permute.xlu0 10
    %311 = vperm.xlu0 %310, %v16
    %v312 = vpop.permute.xlu0 %311
    %v314 = vsel %vm297, %v300, %v287
    %v315 = vsel %vm297, %v304, %v288
    %v316 = vsel %vm297, %v308, %v289
    %v317 = vsel %vm297, %v312, %v290
    %vm318 = vcmp.eq.s32.totalorder %v12, 11
    %v319 = vsel %vm318, 1, 0
    %v320 = vlaneseq
    %v321 = vshrl.u32 %v320, 7
    %v322 = vsub.s32 0, %v321
    %v323 = vrot.slane %v319, %v322
    %vm324 = vcmp.eq.s32.totalorder %v323, 1
    %325 = vset.pattern.permute.xlu0 11
    %326 = vperm.xlu0 %325, %v13
    %v327 = vpop.permute.xlu0 %326
    %329 = vset.pattern.permute.xlu0 11
    %330 = vperm.xlu0 %329, %v14
    %v331 = vpop.permute.xlu0 %330
    %333 = vset.pattern.permute.xlu0 11
    %334 = vperm.xlu0 %333, %v15
    %v335 = vpop.permute.xlu0 %334
    %337 = vset.pattern.permute.xlu0 11
    %338 = vperm.xlu0 %337, %v16
    %v339 = vpop.permute.xlu0 %338
    %v341 = vsel %vm324, %v327, %v314
    %v342 = vsel %vm324, %v331, %v315
    %v343 = vsel %vm324, %v335, %v316
    %v344 = vsel %vm324, %v339, %v317
    %vm345 = vcmp.eq.s32.totalorder %v12, 12
    %v346 = vsel %vm345, 1, 0
    %v347 = vlaneseq
    %v348 = vshrl.u32 %v347, 7
    %v349 = vsub.s32 0, %v348
    %v350 = vrot.slane %v346, %v349
    %vm351 = vcmp.eq.s32.totalorder %v350, 1
    %352 = vset.pattern.permute.xlu0 12
    %353 = vperm.xlu0 %352, %v13
    %v354 = vpop.permute.xlu0 %353
    %356 = vset.pattern.permute.xlu0 12
    %357 = vperm.xlu0 %356, %v14
    %v358 = vpop.permute.xlu0 %357
    %360 = vset.pattern.permute.xlu0 12
    %361 = vperm.xlu0 %360, %v15
    %v362 = vpop.permute.xlu0 %361
    %364 = vset.pattern.permute.xlu0 12
    %365 = vperm.xlu0 %364, %v16
    %v366 = vpop.permute.xlu0 %365
    %v368 = vsel %vm351, %v354, %v341
    %v369 = vsel %vm351, %v358, %v342
    %v370 = vsel %vm351, %v362, %v343
    %v371 = vsel %vm351, %v366, %v344
    %vm372 = vcmp.eq.s32.totalorder %v12, 13
    %v373 = vsel %vm372, 1, 0
    %v374 = vlaneseq
    %v375 = vshrl.u32 %v374, 7
    %v376 = vsub.s32 0, %v375
    %v377 = vrot.slane %v373, %v376
    %vm378 = vcmp.eq.s32.totalorder %v377, 1
    %379 = vset.pattern.permute.xlu0 13
    %380 = vperm.xlu0 %379, %v13
    %v381 = vpop.permute.xlu0 %380
    %383 = vset.pattern.permute.xlu0 13
    %384 = vperm.xlu0 %383, %v14
    %v385 = vpop.permute.xlu0 %384
    %387 = vset.pattern.permute.xlu0 13
    %388 = vperm.xlu0 %387, %v15
    %v389 = vpop.permute.xlu0 %388
    %391 = vset.pattern.permute.xlu0 13
    %392 = vperm.xlu0 %391, %v16
    %v393 = vpop.permute.xlu0 %392
    %v395 = vsel %vm378, %v381, %v368
    %v396 = vsel %vm378, %v385, %v369
    %v397 = vsel %vm378, %v389, %v370
    %v398 = vsel %vm378, %v393, %v371
    %vm399 = vcmp.eq.s32.totalorder %v12, 14
    %v400 = vsel %vm399, 1, 0
    %v401 = vlaneseq
    %v402 = vshrl.u32 %v401, 7
    %v403 = vsub.s32 0, %v402
    %v404 = vrot.slane %v400, %v403
    %vm405 = vcmp.eq.s32.totalorder %v404, 1
    %406 = vset.pattern.permute.xlu0 14
    %407 = vperm.xlu0 %406, %v13
    %v408 = vpop.permute.xlu0 %407
    %410 = vset.pattern.permute.xlu0 14
    %411 = vperm.xlu0 %410, %v14
    %v412 = vpop.permute.xlu0 %411
    %414 = vset.pattern.permute.xlu0 14
    %415 = vperm.xlu0 %414, %v15
    %v416 = vpop.permute.xlu0 %415
    %418 = vset.pattern.permute.xlu0 14
    %419 = vperm.xlu0 %418, %v16
    %v420 = vpop.permute.xlu0 %419
    %v422 = vsel %vm405, %v408, %v395
    %v423 = vsel %vm405, %v412, %v396
    %v424 = vsel %vm405, %v416, %v397
    %v425 = vsel %vm405, %v420, %v398
    %vm426 = vcmp.eq.s32.totalorder %v12, 15
    %v427 = vsel %vm426, 1, 0
    %v428 = vlaneseq
    %v429 = vshrl.u32 %v428, 7
    %v430 = vsub.s32 0, %v429
    %v431 = vrot.slane %v427, %v430
    %vm432 = vcmp.eq.s32.totalorder %v431, 1
    %433 = vset.pattern.permute.xlu0 15
    %434 = vperm.xlu0 %433, %v13
    %v435 = vpop.permute.xlu0 %434
    %437 = vset.pattern.permute.xlu0 15
    %438 = vperm.xlu0 %437, %v14
    %v439 = vpop.permute.xlu0 %438
    %441 = vset.pattern.permute.xlu0 15
    %442 = vperm.xlu0 %441, %v15
    %v443 = vpop.permute.xlu0 %442
    %445 = vset.pattern.permute.xlu0 15
    %446 = vperm.xlu0 %445, %v16
    %v447 = vpop.permute.xlu0 %446
    %v449 = vsel %vm432, %v435, %v422
    %v450 = vsel %vm432, %v439, %v423
    %v451 = vsel %vm432, %v443, %v424
    %v452 = vsel %vm432, %v447, %v425
    %453 = vst [vmem:[#allocation2] sm:$0xff] %v449
    %454 = vst [vmem:[#allocation2 + $0x8] sm:$0xff] %v450
    %455 = vst [vmem:[#allocation2 + $0x10] sm:$0xff] %v451
    %456 = vst [vmem:[#allocation2 + $0x18] sm:$0xff] %v452
    // Predicated region
    $region10: #{tpu_custom_call.1} parent=1 // pred_check
      _
    $region11: #{tpu_custom_call.1} parent=1 // pred_check_branch
      %458 = sbr.rel (0) target = $region13
    $region12: #{tpu_custom_call.1} parent=1 // pred_region
      %s460 = ssub.s32 512, 512
      %461 = vsyncadd [#allocation3], %s460
      %s462 = sshll.u32 [#allocation2], 4
      %s463 = int_to_ptr.vmem [resolvable:$true] %s462
      %468 = dma.vmem_to_hbm [thread:$0]  %s463, 512, %s2, [#allocation3], 128, 128, 8
    $region13: #{tpu_custom_call.1} parent=1 // pred_fallthru
      _
    // Predicated region
    $region14: #{tpu_custom_call.1} parent=1 // pred_check
      _
    $region15: #{tpu_custom_call.1} parent=1 // pred_check_branch
      %470 = sbr.rel (0) target = $region17
    $region16: #{tpu_custom_call.1} parent=1 // pred_region
      %471 = dma.done [#allocation3], 512
    $region17: #{tpu_custom_call.1} parent=1 // pred_fallthru
      _
    %472 = vsyncpa [#allocation3], 1

</llo_original>
